<compile_context>
chip_gen: v5e
topology: v5e:2x2
jax: 0.10.0
libtpu: 0.0.40
codegen_flags: <defaults>
</compile_context>

<pallas_src>
import functools

import jax
import jax.numpy as jnp
from jax import lax
from jax.experimental import pallas as pl
from jax.experimental.pallas import tpu as pltpu

# Python float (NOT a jnp array) so it lowers to a jaxpr literal.
_MASK_NEG = -1e30


def _round_up(x, m):
    return (x + m - 1) // m * m


# --------------------- per-query classification (plain XLA) -----------------
def classify(pred_logits, num_classes, threshold):
    """softmax-max score, argmax class, keep predicate.  Q*C work only."""
    logits = pred_logits.astype(jnp.float32)
    C = logits.shape[-1]
    probs = jax.nn.softmax(logits, axis=-1)
    scores = jnp.max(probs, axis=-1)                       # == softmax(..).max(-1)
    classes = jnp.argmax(logits, axis=-1).astype(jnp.int32)
    if C == num_classes - 1:                               # mirrors the PyTorch branch
        keep = scores > threshold
    else:
        keep = (classes != C - 1) & (scores > threshold)
    return scores, classes, keep


# ------------------------------ pixel kernel --------------------------------
def _seg_kernel(masks_ref, bias_ref, mid_ref, area_ref, *,
                num_queries, num_valid_pixels, tile_p, tiles_per_shard,
                mask_tail):
    Qp = num_queries
    masks = masks_ref[...]                                 # (Qp, TP), pixels on lanes
    if masks.dtype != jnp.float32:
        masks = masks.astype(jnp.float32)                  # bf16 streaming path
    # additive keep bias (0 kept / -1e30 dropped or padded query) instead of
    # a compare+select: one VPU add per element.
    masked = masks + bias_ref[...]                         # (Qp, TP) + (Qp, 1)

    # argmax(softmax(x, axis=0), axis=0) == argmax(x, axis=0); first index on ties.
    mx = jnp.max(masked, axis=0, keepdims=True)            # (1, TP)   sublane reduce
    qrow = lax.broadcasted_iota(jnp.int32, masked.shape, 0)
    winner = jnp.min(jnp.where(masked == mx, qrow, Qp),
                     axis=0, keepdims=True)                # (1, TP) int32
    mid_ref[...] = winner                                  # lane-dense store

    hit = qrow == winner                                   # (Qp, TP)
    if mask_tail:
        # exclude padded pixel lanes from the per-query area histogram
        start = (pl.program_id(0) * tiles_per_shard + pl.program_id(1)) * tile_p
        lane = lax.broadcasted_iota(jnp.int32, (1, tile_p), 1)
        hit = jnp.logical_and(hit, (start + lane) < num_valid_pixels)
    part = jnp.sum(hit.astype(jnp.float32), axis=1, keepdims=True)   # (Qp, 1)

    @pl.when(pl.program_id(1) == 0)
    def _():
        area_ref[...] = jnp.zeros_like(area_ref)
    area_ref[...] += part[None]                            # (1, Qp, 1) per-shard partial


def _choose_tiling(P, Qp, itemsize, num_shards,
                   target_block_bytes, max_masks_vmem_bytes):
    """Pick tile_p (multiple of 128) so a (Qp, tile_p) block is ~target bytes
    and the double-buffered mask working set stays under the VMEM budget."""
    t_target = max(128, (target_block_bytes // (Qp * itemsize)) // 128 * 128)
    t_cap = max(128, (max_masks_vmem_bytes // (2 * Qp * itemsize)) // 128 * 128)
    P128 = _round_up(P, 128)
    t_pix = _round_up((P128 + num_shards - 1) // num_shards, 128)
    tile_p = min(t_target, t_cap, t_pix)

    # Prefer an exact tiling (no pixel-pad copy of the mask array) if one
    # exists reasonably close to the target; otherwise pad P.
    exact = None
    if P % 128 == 0:
        t = tile_p
        while t >= 128:
            if P % (t * num_shards) == 0:
                exact = t
                break
            t -= 128
    if exact is not None and exact * 2 >= tile_p:
        return exact, P
    return tile_p, _round_up(P, tile_p * num_shards)


def segment_and_area(masks_qp, keep_bias, *, num_valid_pixels, tile_p,
                     num_shards, vmem_limit_bytes):
    """masks_qp: (Qp, P_pad); keep_bias: (Qp, 1) f32 in {0, -1e30}.
    Returns per-pixel winner (P,) int32 and per-query area (Qp,) f32."""
    Qp, P_pad = masks_qp.shape
    tiles_per_shard = P_pad // (tile_p * num_shards)
    kern = functools.partial(
        _seg_kernel, num_queries=Qp, num_valid_pixels=num_valid_pixels,
        tile_p=tile_p, tiles_per_shard=tiles_per_shard,
        mask_tail=(P_pad != num_valid_pixels))
    # TODO(synk): sweep pipeline_mode=pl.Buffered(3) on the masks BlockSpec
    # (v6e near-balanced DMA/VPU); kept at the default depth here.
    mid, area = pl.pallas_call(
        kern,
        out_shape=(jax.ShapeDtypeStruct((1, P_pad), jnp.int32),
                   jax.ShapeDtypeStruct((num_shards, Qp, 1), jnp.float32)),
        grid=(num_shards, tiles_per_shard),
        in_specs=[
            pl.BlockSpec((Qp, tile_p),
                         lambda s, t: (0, s * tiles_per_shard + t)),
            pl.BlockSpec((Qp, 1), lambda s, t: (0, 0)),
        ],
        out_specs=(
            pl.BlockSpec((1, tile_p),
                         lambda s, t: (0, s * tiles_per_shard + t)),
            pl.BlockSpec((1, Qp, 1), lambda s, t: (s, 0, 0)),
        ),
        compiler_params=pltpu.CompilerParams(
            dimension_semantics=("parallel", "arbitrary"),
            vmem_limit_bytes=vmem_limit_bytes),
    )(masks_qp, keep_bias)
    return mid[0, :num_valid_pixels], jnp.sum(area[:, :, 0], axis=0)


# ---------------------------------- glue ------------------------------------
def post_process_panoptic_instances(pred_logits, pred_masks, *,
                                    num_classes=20, num_stuff=11,
                                    threshold=0.85, filter_small_option='4',
                                    masks_bf16=False, num_core_shards=1,
                                    target_block_bytes=2 << 20,
                                    max_masks_vmem_bytes=12 << 20):
    Q, C = pred_logits.shape
    Qm, H, W = pred_masks.shape
    assert Q == Qm
    assert num_classes in (20, 24, 47)
    assert filter_small_option in ('4', '4_256', '4096_256')
    P = H * W
    # TODO(synk): set num_core_shards=2 on v7x (2 TensorCores/chip) to split
    # the pixel loop across cores; 1 on v5e/v6e.

    # per-query class probabilities / labels / keep predicate
    scores, classes, keep = classify(pred_logits, num_classes, threshold)

    # TODO(synk): bilinear F.interpolate of masks to processed_size when sizes
    # differ (assumed processed_size == (H, W) here, so it is an identity).
    mask_dtype = jnp.bfloat16 if masks_bf16 else jnp.float32
    itemsize = 2 if masks_bf16 else 4
    sub = 16 if masks_bf16 else 8
    Qp = _round_up(Q, sub)

    tile_p, P_pad = _choose_tiling(P, Qp, itemsize, num_core_shards,
                                   target_block_bytes, max_masks_vmem_bytes)

    masks_qp = pred_masks.reshape(Q, P).astype(mask_dtype)   # pixels on lanes
    if Qp != Q or P_pad != P:
        # one-time HBM copy; the kernel may re-read the array several times.
        masks_qp = jnp.pad(masks_qp, ((0, Qp - Q), (0, P_pad - P)))

    classes_p = jnp.pad(classes, (0, Qp - Q), constant_values=-1)
    keep_p = jnp.pad(keep, (0, Qp - Q), constant_values=False)

    # explicit VMEM budget for the chosen tile (double-buffered mask blocks
    # dominate); safe on v7x's 64 MiB physical VMEM.
    mask_block_bytes = Qp * tile_p * itemsize
    needed = (2 * mask_block_bytes + 2 * tile_p * 4
              + 4 * Qp * 4 + num_core_shards * Qp * 4)
    vmem_limit = int(min(max(2 * needed + (4 << 20), 16 << 20), 48 << 20))

    # stuff-class dedup remap (is_thing_map: class > num_stuff-1 is a thing)
    q_idx = jnp.arange(Qp, dtype=jnp.int32)
    same_class = classes_p[:, None] == classes_p[None, :]
    cand = jnp.where(keep_p[None, :] & same_class, q_idx[None, :], Qp)
    rep = jnp.min(cand, axis=1).astype(jnp.int32)
    is_stuff = classes_p <= (num_stuff - 1)
    is_thing = jnp.logical_not(is_stuff)
    remap = jnp.where(keep_p & is_stuff & (rep < Qp), rep, q_idx).astype(jnp.int32)

    def run_seg(keep_mask):
        bias = jnp.where(keep_mask, 0.0, _MASK_NEG).astype(jnp.float32)
        return segment_and_area(masks_qp, bias.reshape(Qp, 1),
                                num_valid_pixels=P, tile_p=tile_p,
                                num_shards=num_core_shards,
                                vmem_limit_bytes=vmem_limit)

    def small_segments(area):
        if filter_small_option == '4':
            return area <= 4.0
        if filter_small_option == '4_256':
            return jnp.where(is_thing, area < 256.0, area < 4.0)
        return jnp.where(is_thing, area < 256.0, area < 4096.0)   # '4096_256'

    # first pass: raw winners + areas, stuff dedup applied as Q-sized glue ops
    winner0, raw_area0 = run_seg(keep_p)
    mid0 = jnp.take(remap, winner0)                                    # (P,)
    area0 = jnp.zeros((Qp,), jnp.float32).at[remap].add(raw_area0)     # (Qp,)

    # "remove tiny segments and recompute areas" loop as a lax.while_loop;
    # no dedup on later passes (matches the PyTorch module).
    def cond_fn(state):
        keep_cur, _, area = state
        return jnp.any(keep_cur & small_segments(area))

    def body_fn(state):
        keep_cur, _, area = state
        keep_new = keep_cur & jnp.logical_not(small_segments(area))
        mid_new, area_new = run_seg(keep_new)
        return keep_new, mid_new, area_new

    keep_fin, mid_fin, area_fin = lax.while_loop(
        cond_fn, body_fn, (keep_p, mid0, area0))

    # PyTorch fallback: with no surviving query, m_id is an all-zeros image.
    mid_fin = jnp.where(jnp.any(keep_fin), mid_fin, 0)

    # TODO(synk): nearest-neighbour resize of m_id to target_size + the
    # id2rgb/rgb2id PIL round-trip and segments_info dict are host-side.
    # TODO(synk): apply_mask_removal numpy/host path is not translated.
    return {
        'm_id': mid_fin.reshape(H, W),                 # per-pixel segment (query) id
        'area': area_fin[:Q].astype(jnp.int32),        # per-query pixel area
        'scores': scores,
        'classes': classes,
        'keep': keep_fin[:Q],
    }


if __name__ == "__main__":
    key = jax.random.PRNGKey(0)
    Q, C, H, W = 8, 21, 16, 16                  # queries, classes(+no-object), spatial
    k1, k2 = jax.random.split(key)
    pred_logits = 6.0 * jax.random.normal(k1, (Q, C), dtype=jnp.float32)
    pred_masks = 2.0 * jax.random.normal(k2, (Q, H, W), dtype=jnp.float32)

    fn = jax.jit(functools.partial(post_process_panoptic_instances,
                                   num_classes=20, num_stuff=11,
                                   threshold=0.85, filter_small_option='4'))
    out = fn(pred_logits, pred_masks)
    jax.block_until_ready(out)
    print("KERNEL_OK")
</pallas_src>

<mosaic_0001>
module attributes {stable_mosaic.version = 11 : i64} {
  func.func @_seg_kernel(%arg0: i32, %arg1: i32, %arg2: memref<8x256xf32, #tpu.memory_space<vmem>>, %arg3: memref<8x1xf32, #tpu.memory_space<vmem>>, %arg4: memref<1x256xi32, #tpu.memory_space<vmem>>, %arg5: memref<1x8x1xf32, #tpu.memory_space<vmem>>) attributes {dimension_semantics = [#tpu.dimension_semantics<parallel>, #tpu.dimension_semantics<arbitrary>], iteration_bounds = array<i64: 1, 1>, scalar_prefetch = 0 : i64, scratch_operands = 0 : i64, tpu.core_type = #tpu.core_type<tc>, window_params = [{transform_indices = @transform_0, window_bounds = array<i64: 8, 256>}, {pipeline_mode = #tpu.pipeline_mode<synchronous>, transform_indices = @transform_1, window_bounds = array<i64: 8, 1>}, {transform_indices = @transform_2, window_bounds = array<i64: 1, 256>}, {transform_indices = @transform_3, window_bounds = array<i64: 1, 8, 1>}]} {
    %c0 = arith.constant 0 : index
    %c0_0 = arith.constant 0 : index
    %0 = vector.load %arg2[%c0, %c0_0] : memref<8x256xf32, #tpu.memory_space<vmem>>, vector<8x256xf32>
    %c0_1 = arith.constant 0 : index
    %c0_2 = arith.constant 0 : index
    %1 = vector.load %arg3[%c0_1, %c0_2] : memref<8x1xf32, #tpu.memory_space<vmem>>, vector<8x1xf32>
    %2 = vector.broadcast %1 : vector<8x1xf32> to vector<8x256xf32>
    %3 = arith.addf %0, %2 : vector<8x256xf32>
    %cst = arith.constant dense<0xFF800000> : vector<256xf32>
    %4 = vector.multi_reduction <maximumf>, %3, %cst [0] : vector<8x256xf32> to vector<256xf32>
    %5 = vector.shape_cast %4 : vector<256xf32> to vector<1x256xf32>
    %6 = tpu.iota {dimensions = array<i32: 0>} : vector<8x256xi32>
    %7 = vector.broadcast %5 : vector<1x256xf32> to vector<8x256xf32>
    %8 = arith.cmpf oeq, %3, %7 : vector<8x256xf32>
    %c8_i32 = arith.constant 8 : i32
    %9 = vector.broadcast %c8_i32 : i32 to vector<8x256xi32>
    %10 = arith.select %8, %6, %9 : vector<8x256xi1>, vector<8x256xi32>
    %cst_3 = arith.constant dense<2147483647> : vector<256xi32>
    %11 = vector.multi_reduction <minsi>, %10, %cst_3 [0] : vector<8x256xi32> to vector<256xi32>
    %12 = vector.shape_cast %11 : vector<256xi32> to vector<1x256xi32>
    %c0_4 = arith.constant 0 : index
    %c0_5 = arith.constant 0 : index
    %13 = vector.load %arg4[%c0_4, %c0_5] : memref<1x256xi32, #tpu.memory_space<vmem>>, vector<1x256xi32>
    tpu.vector_store %arg4[%c0_4, %c0_5], %12 {strides = array<i32>} : memref<1x256xi32, #tpu.memory_space<vmem>>, vector<1x256xi32>,
    %14 = vector.broadcast %12 : vector<1x256xi32> to vector<8x256xi32>
    %15 = arith.cmpi eq, %6, %14 : vector<8x256xi32>
    %16 = arith.extui %15 : vector<8x256xi1> to vector<8x256xi32>
    %17 = arith.sitofp %16 : vector<8x256xi32> to vector<8x256xf32>
    %cst_6 = arith.constant dense<0.000000e+00> : vector<8xf32>
    %18 = vector.multi_reduction <add>, %17, %cst_6 [1] : vector<8x256xf32> to vector<8xf32>
    %19 = vector.shape_cast %18 : vector<8xf32> to vector<8x1xf32>
    %c0_i32 = arith.constant 0 : i32
    %20 = arith.cmpi eq, %arg1, %c0_i32 : i32
    %21 = arith.extui %20 : i1 to i32
    %c0_i32_7 = arith.constant 0 : i32
    %22 = arith.cmpi ne, %21, %c0_i32_7 : i32
    scf.if %22 {
      %cst_14 = arith.constant 0.000000e+00 : f32
      %27 = vector.broadcast %cst_14 : f32 to vector<1x8x1xf32>
      %c0_15 = arith.constant 0 : index
      %c0_16 = arith.constant 0 : index
      %c0_17 = arith.constant 0 : index
      %28 = vector.load %arg5[%c0_15, %c0_16, %c0_17] : memref<1x8x1xf32, #tpu.memory_space<vmem>>, vector<1x8x1xf32>
      tpu.vector_store %arg5[%c0_15, %c0_16, %c0_17], %27 {strides = array<i32>} : memref<1x8x1xf32, #tpu.memory_space<vmem>>, vector<1x8x1xf32>,
    } else {
    }
    %c0_8 = arith.constant 0 : index
    %c0_9 = arith.constant 0 : index
    %c0_10 = arith.constant 0 : index
    %23 = vector.load %arg5[%c0_8, %c0_9, %c0_10] : memref<1x8x1xf32, #tpu.memory_space<vmem>>, vector<1x8x1xf32>
    %24 = vector.shape_cast %19 : vector<8x1xf32> to vector<1x8x1xf32>
    %25 = arith.addf %23, %24 : vector<1x8x1xf32>
    %c0_11 = arith.constant 0 : index
    %c0_12 = arith.constant 0 : index
    %c0_13 = arith.constant 0 : index
    %26 = vector.load %arg5[%c0_11, %c0_12, %c0_13] : memref<1x8x1xf32, #tpu.memory_space<vmem>>, vector<1x8x1xf32>
    tpu.vector_store %arg5[%c0_11, %c0_12, %c0_13], %25 {strides = array<i32>} : memref<1x8x1xf32, #tpu.memory_space<vmem>>, vector<1x8x1xf32>,
    return
  }
  func.func @transform_0(%arg0: i32, %arg1: i32) -> (i32, i32) {
    %c1_i32 = arith.constant 1 : i32
    %0 = arith.muli %arg0, %c1_i32 : i32
    %1 = arith.addi %0, %arg1 : i32
    %c0_i32 = arith.constant 0 : i32
    %c0_i32_0 = arith.constant 0 : i32
    return %c0_i32, %1 : i32, i32
  }
  func.func @transform_1(%arg0: i32, %arg1: i32) -> (i32, i32) {
    %c0_i32 = arith.constant 0 : i32
    %c0_i32_0 = arith.constant 0 : i32
    %c0_i32_1 = arith.constant 0 : i32
    return %c0_i32, %c0_i32_0 : i32, i32
  }
  func.func @transform_2(%arg0: i32, %arg1: i32) -> (i32, i32) {
    %c1_i32 = arith.constant 1 : i32
    %0 = arith.muli %arg0, %c1_i32 : i32
    %1 = arith.addi %0, %arg1 : i32
    %c0_i32 = arith.constant 0 : i32
    %c0_i32_0 = arith.constant 0 : i32
    return %c0_i32, %1 : i32, i32
  }
  func.func @transform_3(%arg0: i32, %arg1: i32) -> (i32, i32, i32) {
    %c0_i32 = arith.constant 0 : i32
    %c0_i32_0 = arith.constant 0 : i32
    %c0_i32_1 = arith.constant 0 : i32
    return %arg0, %c0_i32, %c0_i32_0 : i32, i32, i32
  }
}

module attributes {stable_mosaic.version = 11 : i64} {
  func.func @_seg_kernel(%arg0: i32, %arg1: i32, %arg2: memref<8x256xf32, #tpu.memory_space<vmem>>, %arg3: memref<8x1xf32, #tpu.memory_space<vmem>>, %arg4: memref<1x256xi32, #tpu.memory_space<vmem>>, %arg5: memref<1x8x1xf32, #tpu.memory_space<vmem>>) attributes {dimension_semantics = [#tpu.dimension_semantics<parallel>, #tpu.dimension_semantics<arbitrary>], iteration_bounds = array<i64: 1, 1>, scalar_prefetch = 0 : i64, scratch_operands = 0 : i64, tpu.core_type = #tpu.core_type<tc>, window_params = [{transform_indices = @transform_0, window_bounds = array<i64: 8, 256>}, {pipeline_mode = #tpu.pipeline_mode<synchronous>, transform_indices = @transform_1, window_bounds = array<i64: 8, 1>}, {transform_indices = @transform_2, window_bounds = array<i64: 1, 256>}, {transform_indices = @transform_3, window_bounds = array<i64: 1, 8, 1>}]} {
    %c0 = arith.constant 0 : index
    %c0_0 = arith.constant 0 : index
    %0 = vector.load %arg2[%c0, %c0_0] : memref<8x256xf32, #tpu.memory_space<vmem>>, vector<8x256xf32>
    %c0_1 = arith.constant 0 : index
    %c0_2 = arith.constant 0 : index
    %1 = vector.load %arg3[%c0_1, %c0_2] : memref<8x1xf32, #tpu.memory_space<vmem>>, vector<8x1xf32>
    %2 = vector.broadcast %1 : vector<8x1xf32> to vector<8x256xf32>
    %3 = arith.addf %0, %2 : vector<8x256xf32>
    %cst = arith.constant dense<0xFF800000> : vector<256xf32>
    %4 = vector.multi_reduction <maximumf>, %3, %cst [0] : vector<8x256xf32> to vector<256xf32>
    %5 = vector.shape_cast %4 : vector<256xf32> to vector<1x256xf32>
    %6 = tpu.iota {dimensions = array<i32: 0>} : vector<8x256xi32>
    %7 = vector.broadcast %5 : vector<1x256xf32> to vector<8x256xf32>
    %8 = arith.cmpf oeq, %3, %7 : vector<8x256xf32>
    %c8_i32 = arith.constant 8 : i32
    %9 = vector.broadcast %c8_i32 : i32 to vector<8x256xi32>
    %10 = arith.select %8, %6, %9 : vector<8x256xi1>, vector<8x256xi32>
    %cst_3 = arith.constant dense<2147483647> : vector<256xi32>
    %11 = vector.multi_reduction <minsi>, %10, %cst_3 [0] : vector<8x256xi32> to vector<256xi32>
    %12 = vector.shape_cast %11 : vector<256xi32> to vector<1x256xi32>
    %c0_4 = arith.constant 0 : index
    %c0_5 = arith.constant 0 : index
    %13 = vector.load %arg4[%c0_4, %c0_5] : memref<1x256xi32, #tpu.memory_space<vmem>>, vector<1x256xi32>
    tpu.vector_store %arg4[%c0_4, %c0_5], %12 {strides = array<i32>} : memref<1x256xi32, #tpu.memory_space<vmem>>, vector<1x256xi32>,
    %14 = vector.broadcast %12 : vector<1x256xi32> to vector<8x256xi32>
    %15 = arith.cmpi eq, %6, %14 : vector<8x256xi32>
    %16 = arith.extui %15 : vector<8x256xi1> to vector<8x256xi32>
    %17 = arith.sitofp %16 : vector<8x256xi32> to vector<8x256xf32>
    %cst_6 = arith.constant dense<0.000000e+00> : vector<8xf32>
    %18 = vector.multi_reduction <add>, %17, %cst_6 [1] : vector<8x256xf32> to vector<8xf32>
    %19 = vector.shape_cast %18 : vector<8xf32> to vector<8x1xf32>
    %c0_i32 = arith.constant 0 : i32
    %20 = arith.cmpi eq, %arg1, %c0_i32 : i32
    %21 = arith.extui %20 : i1 to i32
    %c0_i32_7 = arith.constant 0 : i32
    %22 = arith.cmpi ne, %21, %c0_i32_7 : i32
    scf.if %22 {
      %cst_14 = arith.constant 0.000000e+00 : f32
      %27 = vector.broadcast %cst_14 : f32 to vector<1x8x1xf32>
      %c0_15 = arith.constant 0 : index
      %c0_16 = arith.constant 0 : index
      %c0_17 = arith.constant 0 : index
      %28 = vector.load %arg5[%c0_15, %c0_16, %c0_17] : memref<1x8x1xf32, #tpu.memory_space<vmem>>, vector<1x8x1xf32>
      tpu.vector_store %arg5[%c0_15, %c0_16, %c0_17], %27 {strides = array<i32>} : memref<1x8x1xf32, #tpu.memory_space<vmem>>, vector<1x8x1xf32>,
    } else {
    }
    %c0_8 = arith.constant 0 : index
    %c0_9 = arith.constant 0 : index
    %c0_10 = arith.constant 0 : index
    %23 = vector.load %arg5[%c0_8, %c0_9, %c0_10] : memref<1x8x1xf32, #tpu.memory_space<vmem>>, vector<1x8x1xf32>
    %24 = vector.shape_cast %19 : vector<8x1xf32> to vector<1x8x1xf32>
    %25 = arith.addf %23, %24 : vector<1x8x1xf32>
    %c0_11 = arith.constant 0 : index
    %c0_12 = arith.constant 0 : index
    %c0_13 = arith.constant 0 : index
    %26 = vector.load %arg5[%c0_11, %c0_12, %c0_13] : memref<1x8x1xf32, #tpu.memory_space<vmem>>, vector<1x8x1xf32>
    tpu.vector_store %arg5[%c0_11, %c0_12, %c0_13], %25 {strides = array<i32>} : memref<1x8x1xf32, #tpu.memory_space<vmem>>, vector<1x8x1xf32>,
    return
  }
  func.func @transform_0(%arg0: i32, %arg1: i32) -> (i32, i32) {
    %c1_i32 = arith.constant 1 : i32
    %0 = arith.muli %arg0, %c1_i32 : i32
    %1 = arith.addi %0, %arg1 : i32
    %c0_i32 = arith.constant 0 : i32
    %c0_i32_0 = arith.constant 0 : i32
    return %c0_i32, %1 : i32, i32
  }
  func.func @transform_1(%arg0: i32, %arg1: i32) -> (i32, i32) {
    %c0_i32 = arith.constant 0 : i32
    %c0_i32_0 = arith.constant 0 : i32
    %c0_i32_1 = arith.constant 0 : i32
    return %c0_i32, %c0_i32_0 : i32, i32
  }
  func.func @transform_2(%arg0: i32, %arg1: i32) -> (i32, i32) {
    %c1_i32 = arith.constant 1 : i32
    %0 = arith.muli %arg0, %c1_i32 : i32
    %1 = arith.addi %0, %arg1 : i32
    %c0_i32 = arith.constant 0 : i32
    %c0_i32_0 = arith.constant 0 : i32
    return %c0_i32, %1 : i32, i32
  }
  func.func @transform_3(%arg0: i32, %arg1: i32) -> (i32, i32, i32) {
    %c0_i32 = arith.constant 0 : i32
    %c0_i32_0 = arith.constant 0 : i32
    %c0_i32_1 = arith.constant 0 : i32
    return %arg0, %c0_i32, %c0_i32_0 : i32, i32, i32
  }
}

</mosaic_0001>

<llo_original>
// kernel: post_process_panoptic_instances.1
$region0: #{post_process_panoptic_instances.1}
  #allocation0 [shape = 'u32[]', space=smem, size = 0x4, offset = 0x4, fixed_abs, tag = 'smem constant byte address 0x4 - core index']
  #allocation1 [shape = 'u32[72,128]{1,0:T(1,128)}', space=vmem, size = 0x9000, scoped, tag = 'internal scratch']
  %s0 = inlined_call_operand.vmem [shape: f32[8,256], index: 0, kind: input, shape index: {}]
  %s1 = inlined_call_operand.vmem [shape: f32[8,1], index: 1, kind: input, shape index: {}]
  %s2 = inlined_call_operand.vmem [shape: s32[1,256], index: 2, kind: output, shape index: {0}]
  %s3 = inlined_call_operand.vmem [shape: f32[1,8,1], index: 3, kind: output, shape index: {1}]
  %4 = xla_tuple %s2, %s3
  %s5 = sld [smem:[#allocation0]]
  $region30: #{post_process_panoptic_instances.1} parent=0
    _
  %s7 = ssub.s32 1, %s5
  %s8 = scalar_select 0, %s7, %s5
  // Predicated region
  $region2: #{post_process_panoptic_instances.1} parent=0 // pred_check
    _
  $region3: #{post_process_panoptic_instances.1} parent=0 // pred_check_branch
    %10 = sbr.rel (0) target = $region5
  $region4: #{post_process_panoptic_instances.1} parent=0 // pred_region
    %s11 = sadd.s32 0, 0
    %s12 = smul.u32 2, %s11
    %p13 = scmp.lt.s32.totalorder %s12, 1
    %s14 = scalar_select %p13, %s12, 1
    %s15 = smul.addr %s14, 8
    %s16 = scalar_lea.vmem %s0, %s15
    %s17 = sadd.s32 0, 0
    %s18 = smul.u32 2, %s17
  $region5: #{post_process_panoptic_instances.1} parent=0 // pred_fallthru
    _
  // Predicated region
  $region6: #{post_process_panoptic_instances.1} parent=0 // pred_check
    _
  $region7: #{post_process_panoptic_instances.1} parent=0 // pred_check_branch
    %20 = sbr.rel (0) target = $region9
  $region8: #{post_process_panoptic_instances.1} parent=0 // pred_region
    _
  $region9: #{post_process_panoptic_instances.1} parent=0 // pred_fallthru
    _
  %s21 = sadd.s32 0, 0
  %s22 = smul.u32 2, %s21
  %p23 = scmp.lt.s32.totalorder %s22, 1
  %s24 = scalar_select %p23, %s22, 1
  %s25 = smul.addr %s24, 8
  %s26 = scalar_lea.vmem %s0, %s25
  %s27 = sadd.s32 0, 0
  %s28 = smul.u32 2, %s27
  %p29 = scmp.lt.s32.totalorder %s28, 1
  %s30 = scalar_select %p29, %s28, 1
  %s31 = scalar_lea.vmem %s2, %s30
  %s32 = sadd.s32 0, 0
  %s33 = smul.u32 2, %s32
  %p34 = scmp.lt.s32.totalorder %s33, 1
  %s35 = scalar_select %p34, %s33, 1
  %s36 = smul.addr %s35, 8
  %s37 = scalar_lea.vmem %s0, %s36
  %s38 = sadd.s32 0, 0
  %s39 = smul.u32 2, %s38
  %s40 = sadd.s32 0, 0
  %s41 = smul.u32 2, %s40
  %p42 = scmp.lt.s32.totalorder %s41, 1
  %s43 = scalar_select %p42, %s41, 1
  %s44 = scalar_lea.vmem %s2, %s43
  %s45 = sadd.s32 0, 0
  %s46 = smul.u32 2, %s45
  %v47 = vld [vmem:[%s37] sm:$0xff]
  %v48 = vld [vmem:[%s37 + $0x8] sm:$0xff]
  %v49 = vld [vmem:[%s1] sm:$0xff]
  %51 = vset.pattern.permute.xlu0 0
  %52 = vperm.xlu0 %51, %v49
  %v53 = vpop.permute.xlu0 %52
  %v55 = vadd.f32 %v47, %v53
  %v56 = vadd.f32 %v48, %v53
  %v57 = vrot.slane %v55, 4
  %v58 = vmax.f32 %v55, %v57
  %v59 = vrot.slane %v58, 2
  %v60 = vmax.f32 %v58, %v59
  %v61 = vrot.slane %v60, 1
  %v62 = vmax.f32 %v60, %v61
  %v63 = vrot.slane %v56, 4
  %v64 = vmax.f32 %v56, %v63
  %v65 = vrot.slane %v64, 2
  %v66 = vmax.f32 %v64, %v65
  %v67 = vrot.slane %v66, 1
  %v68 = vmax.f32 %v66, %v67
  %v69 = vlaneseq
  %v70 = vshrl.u32 %v69, 7
  %vm71 = vcmp.eq.f32.partialorder %v55, %v62
  %vm72 = vcmp.eq.f32.partialorder %v56, %v68
  %v73 = vsel %vm71, %v70, 8
  %v74 = vsel %vm72, %v70, 8
  %v75 = vrot.slane %v73, 4
  %vm76 = vcmp.lt.s32.totalorder %v73, %v75
  %v77 = vsel %vm76, %v73, %v75
  %v78 = vrot.slane %v77, 2
  %vm79 = vcmp.lt.s32.totalorder %v77, %v78
  %v80 = vsel %vm79, %v77, %v78
  %v81 = vrot.slane %v80, 1
  %vm82 = vcmp.lt.s32.totalorder %v80, %v81
  %v83 = vsel %vm82, %v80, %v81
  %v84 = vrot.slane %v74, 4
  %vm85 = vcmp.lt.s32.totalorder %v74, %v84
  %v86 = vsel %vm85, %v74, %v84
  %v87 = vrot.slane %v86, 2
  %vm88 = vcmp.lt.s32.totalorder %v86, %v87
  %v89 = vsel %vm88, %v86, %v87
  %v90 = vrot.slane %v89, 1
  %vm91 = vcmp.lt.s32.totalorder %v89, %v90
  %v92 = vsel %vm91, %v89, %v90
  %v93 = vrot.slane %v92, 7
  %vm94 = vcmask 1040384
  %v95 = vsel %vm94, %v83, %v93
  %v96 = vlaneseq
  %vm97 = vcmp.ge.s32.totalorder %v96, 0
  %vm98 = vcmp.lt.s32.totalorder %v96, 256
  %vm99 = vmand %vm97, %vm98
  %100 = vst.msk [vmem:[%s44] sm:$0x3] %vm99, %v95
  %vm101 = vcmp.eq.s32.totalorder %v70, %v83
  %vm102 = vcmp.eq.s32.totalorder %v70, %v92
  %v103 = vsel %vm101, 1, 0
  %v104 = vsel %vm102, 1, 0
  %v105 = vcvt.s32.f32 %v103
  %v106 = vcvt.s32.f32 %v104
  %v107 = vadd.f32 %v105, %v106
  %108 = vadd.xlane.f32.xlu0 %v107
  %v109 = vpop.xlane.xlu0 %108
  %p110 = scmp.eq.s32.totalorder 0, 0
  // Predicated region
  $region10: #{post_process_panoptic_instances.1} parent=0 // pred_check
    %p111 = pneg %p110
  $region11: #{post_process_panoptic_instances.1} parent=0 // pred_check_branch
    %113 = sbr.rel (%p111) target = $region13
  $region12: #{post_process_panoptic_instances.1} parent=0 // pred_region
    %vm114 = vcmask 7168
    %115 = vst.msk [vmem:[%s3] sm:$0xff] %vm114, 0.0
  $region13: #{post_process_panoptic_instances.1} parent=0 // pred_fallthru
    _
  %v116 = vld [vmem:[%s3] sm:$0xff]
  %v117 = vadd.f32 %v116, %v109
  %vm118 = vcmask 7168
  %119 = vst.msk [vmem:[%s3] sm:$0xff] %vm118, %v117
  %s120 = sadd.s32 0, 0
  %s121 = smul.u32 2, %s120
  %p122 = scmp.lt.s32.totalorder %s121, 1
  %s123 = scalar_select %p122, %s121, 1
  %s124 = scalar_lea.vmem %s2, %s123
  // Predicated region
  $region14: #{post_process_panoptic_instances.1} parent=0 // pred_check
    _
  $region15: #{post_process_panoptic_instances.1} parent=0 // pred_check_branch
    %126 = sbr.rel (0) target = $region17
  $region16: #{post_process_panoptic_instances.1} parent=0 // pred_region
    %s127 = sadd.s32 0, 0
    %s128 = smul.u32 2, %s127
  $region17: #{post_process_panoptic_instances.1} parent=0 // pred_fallthru
    _
  // Predicated region
  $region18: #{post_process_panoptic_instances.1} parent=0 // pred_check
    _
  $region19: #{post_process_panoptic_instances.1} parent=0 // pred_check_branch
    %130 = sbr.rel (0) target = $region21
  $region20: #{post_process_panoptic_instances.1} parent=0 // pred_region
    _
  $region21: #{post_process_panoptic_instances.1} parent=0 // pred_fallthru
    _
  // Predicated region
  $region22: #{post_process_panoptic_instances.1} parent=0 // pred_check
    _
  $region23: #{post_process_panoptic_instances.1} parent=0 // pred_check_branch
    %132 = sbr.rel (0) target = $region25
  $region24: #{post_process_panoptic_instances.1} parent=0 // pred_region
    %s133 = sadd.s32 0, 0
    %s134 = smul.u32 2, %s133
    %p135 = scmp.lt.s32.totalorder %s134, 1
    %s136 = scalar_select %p135, %s134, 1
    %s137 = scalar_lea.vmem %s2, %s136
  $region25: #{post_process_panoptic_instances.1} parent=0 // pred_fallthru
    _
  // Predicated region
  $region26: #{post_process_panoptic_instances.1} parent=0 // pred_check
    _
  $region27: #{post_process_panoptic_instances.1} parent=0 // pred_check_branch
    %139 = sbr.rel (0) target = $region29
  $region28: #{post_process_panoptic_instances.1} parent=0 // pred_region
    _
  $region29: #{post_process_panoptic_instances.1} parent=0 // pred_fallthru
    _

// kernel: body.3
$region0: #{body.3}
  #allocation0 [shape = 'u32[]', space=smem, size = 0x4, offset = 0x4, fixed_abs, tag = 'smem constant byte address 0x4 - core index']
  #allocation1 [shape = 'u32[72,128]{1,0:T(1,128)}', space=vmem, size = 0x9000, scoped, tag = 'internal scratch']
  %s0 = inlined_call_operand.vmem [shape: f32[8,256], index: 0, kind: input, shape index: {}]
  %s1 = inlined_call_operand.vmem [shape: f32[8,1], index: 1, kind: input, shape index: {}]
  %s2 = inlined_call_operand.hbm [shape: s32[1,256], index: 2, kind: output, shape index: {0}]
  %s3 = inlined_call_operand.vmem [shape: f32[1,8,1], index: 3, kind: output, shape index: {1}]
  %4 = xla_tuple %s2, %s3
  %s5 = sld [smem:[#allocation0]]
  $region30: #{body.3} parent=0
    _
  %s7 = ssub.s32 1, %s5
  %s8 = scalar_select 0, %s7, %s5
  $region1: #{body.3} parent=0
    #allocation2 [shape = 'u8[1024]{0}', space=vmem, size = 0x400, scoped, tag = 'output window, operand 0, single buffered']
    #allocation3 [shape = 's32[1]{0}', space=sflag, size = 0x4, scoped, tag = 'scoped memory for body.3']
    %9 = vsyncpa [#allocation3], 0
    // Predicated region
    $region2: #{body.3} parent=1 // pred_check
      _
    $region3: #{body.3} parent=1 // pred_check_branch
      %11 = sbr.rel (0) target = $region5
    $region4: #{body.3} parent=1 // pred_region
      %s12 = sadd.s32 0, 0
      %s13 = smul.u32 2, %s12
      %p14 = scmp.lt.s32.totalorder %s13, 1
      %s15 = scalar_select %p14, %s13, 1
      %s16 = smul.addr %s15, 8
      %s17 = scalar_lea.vmem %s0, %s16
      %s18 = sadd.s32 0, 0
      %s19 = smul.u32 2, %s18
    $region5: #{body.3} parent=1 // pred_fallthru
      _
    // Predicated region
    $region6: #{body.3} parent=1 // pred_check
      _
    $region7: #{body.3} parent=1 // pred_check_branch
      %21 = sbr.rel (0) target = $region9
    $region8: #{body.3} parent=1 // pred_region
      _
    $region9: #{body.3} parent=1 // pred_fallthru
      _
    %s22 = sadd.s32 0, 0
    %s23 = smul.u32 2, %s22
    %p24 = scmp.lt.s32.totalorder %s23, 1
    %s25 = scalar_select %p24, %s23, 1
    %s26 = smul.addr %s25, 8
    %s27 = scalar_lea.vmem %s0, %s26
    %s28 = sadd.s32 0, 0
    %s29 = smul.u32 2, %s28
    %p30 = scmp.lt.s32.totalorder %s29, 1
    %s31 = scalar_select %p30, %s29, 1
    %s32 = smul.addr %s31, 8
    %s33 = scalar_lea.vmem %s0, %s32
    %s34 = sadd.s32 0, 0
    %s35 = smul.u32 2, %s34
    %s36 = sadd.s32 0, 0
    %s37 = smul.u32 2, %s36
    %v38 = vld [vmem:[%s33] sm:$0xff]
    %v39 = vld [vmem:[%s33 + $0x8] sm:$0xff]
    %v40 = vld [vmem:[%s1] sm:$0xff]
    %42 = vset.pattern.permute.xlu0 0
    %43 = vperm.xlu0 %42, %v40
    %v44 = vpop.permute.xlu0 %43
    %v46 = vadd.f32 %v38, %v44
    %v47 = vadd.f32 %v39, %v44
    %v48 = vrot.slane %v46, 4
    %v49 = vmax.f32 %v46, %v48
    %v50 = vrot.slane %v49, 2
    %v51 = vmax.f32 %v49, %v50
    %v52 = vrot.slane %v51, 1
    %v53 = vmax.f32 %v51, %v52
    %v54 = vrot.slane %v47, 4
    %v55 = vmax.f32 %v47, %v54
    %v56 = vrot.slane %v55, 2
    %v57 = vmax.f32 %v55, %v56
    %v58 = vrot.slane %v57, 1
    %v59 = vmax.f32 %v57, %v58
    %v60 = vlaneseq
    %v61 = vshrl.u32 %v60, 7
    %vm62 = vcmp.eq.f32.partialorder %v46, %v53
    %vm63 = vcmp.eq.f32.partialorder %v47, %v59
    %v64 = vsel %vm62, %v61, 8
    %v65 = vsel %vm63, %v61, 8
    %v66 = vrot.slane %v64, 4
    %vm67 = vcmp.lt.s32.totalorder %v64, %v66
    %v68 = vsel %vm67, %v64, %v66
    %v69 = vrot.slane %v68, 2
    %vm70 = vcmp.lt.s32.totalorder %v68, %v69
    %v71 = vsel %vm70, %v68, %v69
    %v72 = vrot.slane %v71, 1
    %vm73 = vcmp.lt.s32.totalorder %v71, %v72
    %v74 = vsel %vm73, %v71, %v72
    %v75 = vrot.slane %v65, 4
    %vm76 = vcmp.lt.s32.totalorder %v65, %v75
    %v77 = vsel %vm76, %v65, %v75
    %v78 = vrot.slane %v77, 2
    %vm79 = vcmp.lt.s32.totalorder %v77, %v78
    %v80 = vsel %vm79, %v77, %v78
    %v81 = vrot.slane %v80, 1
    %vm82 = vcmp.lt.s32.totalorder %v80, %v81
    %v83 = vsel %vm82, %v80, %v81
    %v84 = vrot.slane %v83, 7
    %vm85 = vcmask 1040384
    %v86 = vsel %vm85, %v74, %v84
    %v87 = vlaneseq
    %vm88 = vcmp.ge.s32.totalorder %v87, 0
    %vm89 = vcmp.lt.s32.totalorder %v87, 256
    %vm90 = vmand %vm88, %vm89
    %91 = vst.msk [vmem:[#allocation2] sm:$0x3] %vm90, %v86
    %vm92 = vcmp.eq.s32.totalorder %v61, %v74
    %vm93 = vcmp.eq.s32.totalorder %v61, %v83
    %v94 = vsel %vm92, 1, 0
    %v95 = vsel %vm93, 1, 0
    %v96 = vcvt.s32.f32 %v94
    %v97 = vcvt.s32.f32 %v95
    %v98 = vadd.f32 %v96, %v97
    %99 = vadd.xlane.f32.xlu0 %v98
    %v100 = vpop.xlane.xlu0 %99
    %p101 = scmp.eq.s32.totalorder 0, 0
    // Predicated region
    $region10: #{body.3} parent=1 // pred_check
      %p102 = pneg %p101
    $region11: #{body.3} parent=1 // pred_check_branch
      %104 = sbr.rel (%p102) target = $region13
    $region12: #{body.3} parent=1 // pred_region
      %vm105 = vcmask 7168
      %106 = vst.msk [vmem:[%s3] sm:$0xff] %vm105, 0.0
    $region13: #{body.3} parent=1 // pred_fallthru
      _
    %v107 = vld [vmem:[%s3] sm:$0xff]
    %v108 = vadd.f32 %v107, %v100
    %vm109 = vcmask 7168
    %110 = vst.msk [vmem:[%s3] sm:$0xff] %vm109, %v108
    // Predicated region
    $region14: #{body.3} parent=1 // pred_check
      _
    $region15: #{body.3} parent=1 // pred_check_branch
      %112 = sbr.rel (0) target = $region17
    $region16: #{body.3} parent=1 // pred_region
      %s113 = sadd.s32 0, 0
      %s114 = smul.u32 2, %s113
      %116 = vsyncadd [#allocation3], 0
      %s117 = scalar_lea.hbm %s2, %s114
      %s119 = sshll.u32 [#allocation2], 4
      %s120 = int_to_ptr.vmem [resolvable:$true] %s119
      %s121 = sshll.u32 %s117, 4
      %s122 = int_to_ptr.hbm [resolvable:$true] %s121
      %124 = dma.vmem_to_hbm [thread:$0]  %s120, 32, %s122, [#allocation3]
    $region17: #{body.3} parent=1 // pred_fallthru
      _
    // Predicated region
    $region18: #{body.3} parent=1 // pred_check
      _
    $region19: #{body.3} parent=1 // pred_check_branch
      %126 = sbr.rel (0) target = $region21
    $region20: #{body.3} parent=1 // pred_region
      _
    $region21: #{body.3} parent=1 // pred_fallthru
      _
    // Predicated region
    $region22: #{body.3} parent=1 // pred_check
      _
    $region23: #{body.3} parent=1 // pred_check_branch
      %128 = sbr.rel (0) target = $region25
    $region24: #{body.3} parent=1 // pred_region
      %130 = dma.done [#allocation3], 32
    $region25: #{body.3} parent=1 // pred_fallthru
      _
    // Predicated region
    $region26: #{body.3} parent=1 // pred_check
      _
    $region27: #{body.3} parent=1 // pred_check_branch
      %132 = sbr.rel (0) target = $region29
    $region28: #{body.3} parent=1 // pred_region
      _
    $region29: #{body.3} parent=1 // pred_fallthru
      _
    %133 = vsyncpa [#allocation3], 1

</llo_original>
